<compile_context>
chip_gen: v7x
topology: tpu7x:2x2x1
jax: 0.10.0
libtpu: 0.0.40
codegen_flags: <defaults>
</compile_context>

<pallas_src>
import jax
import jax.numpy as jnp
from jax.experimental import pallas as pl
from jax.experimental.pallas import tpu as pltpu


def _additive_attention_kernel(x_ref, w1_ref, b1_ref, w2_ref, b2_ref,
                               ctx_ref, attn_ref):
    TB, S, D = x_ref.shape
    H = w1_ref.shape[1]

    x = x_ref[...]                                    # (TB, S, D)
    x2d = x.reshape(TB * S, D)                        # fuse batch rows for the MXU

    # query_key = Linear(D -> H): one fused (TB*S, D) @ (D, H) matmul.
    qk = jnp.dot(x2d, w1_ref[...],
                 preferred_element_type=jnp.float32) + b1_ref[...]   # (TB*S, H)
    e = jnp.tanh(qk)

    # energy = Linear(H -> 1).squeeze(-1): VPU multiply + lane reduction over H,
    # producing scores directly as (TB, S) (no width-1 MXU matmul, no transpose
    # needed before the attention-weight store).
    scores = jnp.sum(e.reshape(TB, S, H) * w2_ref[...], axis=-1) + b2_ref[0, 0]

    # softmax over the sequence (lane) axis
    m = jnp.max(scores, axis=-1, keepdims=True)
    p = jnp.exp(scores - m)                                           # (TB, S)
    denom = jnp.sum(p, axis=-1, keepdims=True)
    r = pl.reciprocal(denom, approx=True)        # EUP slot (essentially free)
    r = r * (2.0 - denom * r)                    # one Newton step -> ~f32 exact
    attn = p * r                                                      # (TB, S)

    # context[b, :] = attn[b, :] @ x[b, :, :]  — batched MXU contraction.
    # Only a (TB, D) result stays live; the previous broadcast-multiply + sum
    # materialized a (TB, S, D) f32 temporary (vreg spills / VPU+XLU hotspot).
    ctx = jnp.einsum("bqs,bsd->bqd", attn[:, None, :],
                     x.astype(jnp.float32),
                     preferred_element_type=jnp.float32)              # (TB,1,D)
    ctx = ctx.reshape(TB, D)

    ctx_ref[...] = ctx.astype(ctx_ref.dtype)
    attn_ref[...] = attn.astype(attn_ref.dtype)


def _tpu_vmem_and_cores():
    """Return (physical VMEM bytes per TensorCore, chip has >=2 TensorCores)."""
    phys_vmem = 128 << 20          # v5e / v6e
    multi_core = False
    try:
        kind = jax.devices()[0].device_kind.lower()
    except Exception:
        kind = ""
    if "v7" in kind:
        phys_vmem = 64 << 20       # v7x: 64 MiB per TensorCore, 2 TCs / chip
        multi_core = True
    elif ("v4" in kind) or ("v5p" in kind) or (
            "v5" in kind and "lite" not in kind and "v5e" not in kind):
        multi_core = True          # megacore parts
    return phys_vmem, multi_core


def _choose_block_b(B, S, D, H, x_item, out_item, phys_vmem, multi_core):
    """Largest batch block that fits the per-generation VMEM budget."""
    weights_bytes = (D * H + 2 * H) * 4
    # Budget for the streamed tensors: half of physical VMEM, minus the
    # resident weights and some compiler-scratch slack.
    budget = phys_vmem // 2 - weights_bytes - (2 << 20)
    per_row = 2 * S * D * x_item + 2 * (D + S) * out_item   # double-buffered
    max_bb = max(1, budget // per_row)

    bb = min(B, max_bb)
    if bb < B:
        # Partial blocks: keep the sublane axis of the (bb, D) / (bb, S) output
        # blocks 8-aligned (block dims must be multiples of 8 or the full dim).
        bb = max(8, (bb // 8) * 8)
    # Multi-TensorCore chips: keep >= 2 steps on the parallel grid axis so both
    # cores get work, as long as the split stays 8-aligned.
    if multi_core and B > 1 and bb >= B:
        half = ((pl.cdiv(B, 2) + 7) // 8) * 8
        if half < B:
            bb = half
    return min(bb, B)


def additive_attention(x, w1, b1, w2, b2, *, block_b=None):
    """x: (B, S, D); w1: (D, H); b1: (1, H); w2: (H, 1); b2: (1, 1)."""
    B, S, D = x.shape
    H = w1.shape[1]
    w2_row = w2.reshape(1, H)      # broadcast row for the VPU H-reduction

    x_item = x.dtype.itemsize
    out_item = x.dtype.itemsize
    phys_vmem, multi_core = _tpu_vmem_and_cores()

    if block_b is None:
        block_b = _choose_block_b(B, S, D, H, x_item, out_item,
                                  phys_vmem, multi_core)
    nb = pl.cdiv(B, block_b)
    # NOTE: when B % block_b != 0 the padded rows of the last x block hold
    # undefined data; all math is row-local (softmax / per-batch contraction)
    # and the partial-block writeback masks those rows, so they never leak.

    weights_bytes = (D * H + 2 * H) * 4
    need_bytes = (2 * block_b * S * D * x_item            # double-buffered x
                  + 2 * block_b * (D + S) * out_item      # double-buffered outs
                  + weights_bytes)
    vmem_limit = int(min(phys_vmem - (8 << 20),
                         max(need_bytes + (4 << 20), 32 << 20)))

    cost = pl.CostEstimate(
        flops=2 * B * S * D * H + 2 * B * S * H + 2 * B * S * D,
        transcendentals=B * S * (H + 1) + B,
        bytes_accessed=(B * S * D * x_item + B * (S + D) * out_item
                        + (D * H + 2 * H + 1) * 4))

    grid_spec = pltpu.PrefetchScalarGridSpec(
        num_scalar_prefetch=0,
        grid=(nb,),
        in_specs=[
            pl.BlockSpec((block_b, S, D), lambda b: (b, 0, 0)),   # x block
            pl.BlockSpec((D, H), lambda b: (0, 0)),               # W1 (resident)
            pl.BlockSpec((1, H), lambda b: (0, 0)),               # b1
            pl.BlockSpec((1, H), lambda b: (0, 0)),               # W2 as a row
            pl.BlockSpec(memory_space=pltpu.MemorySpace.SMEM),    # b2 scalar
        ],
        out_specs=[
            pl.BlockSpec((block_b, D), lambda b: (b, 0)),         # context
            pl.BlockSpec((block_b, S), lambda b: (b, 0)),         # attention
        ],
    )

    ctx, attn = pl.pallas_call(
        _additive_attention_kernel,
        grid_spec=grid_spec,
        out_shape=(
            jax.ShapeDtypeStruct((B, D), x.dtype),
            jax.ShapeDtypeStruct((B, S), x.dtype),
        ),
        compiler_params=pltpu.CompilerParams(
            dimension_semantics=("parallel",),
            vmem_limit_bytes=vmem_limit),
        cost_estimate=cost,
    )(x, w1, b1, w2_row, b2)
    return ctx, attn


def additive_attention_ref(x, w1, b1, w2, b2):
    qk = jnp.einsum("bsd,dh->bsh", x, w1) + b1[0]
    e = jnp.tanh(qk)
    energy = (jnp.einsum("bsh,ho->bso", e, w2) + b2[0]).squeeze(-1)   # (B, S)
    attn = jax.nn.softmax(energy, axis=-1)
    ctx = jnp.einsum("bs,bsd->bd", attn, x)
    return ctx, attn


def _make_inputs(key, B, S, D, H):
    kx, kw1, kb1, kw2, kb2 = jax.random.split(key, 5)
    x = jax.random.normal(kx, (B, S, D), dtype=jnp.float32)
    # Deterministic parameter init (shapes match nn.Linear(D,H) / nn.Linear(H,1)).
    w1 = jax.random.normal(kw1, (D, H), dtype=jnp.float32) * (1.0 / D ** 0.5)
    b1 = jax.random.normal(kb1, (1, H), dtype=jnp.float32) * 0.01
    w2 = jax.random.normal(kw2, (H, 1), dtype=jnp.float32) * (1.0 / H ** 0.5)
    b2 = jax.random.normal(kb2, (1, 1), dtype=jnp.float32) * 0.01
    return x, w1, b1, w2, b2


if __name__ == "__main__":
    key = jax.random.PRNGKey(0)
    k_small, k_big = jax.random.split(key, 2)

    # Small shapes consistent with the module: batch=2, seq=8, D=32, H=64.
    x, w1, b1, w2, b2 = _make_inputs(k_small, 2, 8, 32, 64)
    ctx, attn = additive_attention(x, w1, b1, w2, b2)
    jax.block_until_ready((ctx, attn))
    ctx_r, attn_r = additive_attention_ref(x, w1, b1, w2, b2)
    assert jnp.allclose(ctx, ctx_r, atol=2e-5, rtol=2e-5)
    assert jnp.allclose(attn, attn_r, atol=2e-5, rtol=2e-5)

    # Slightly larger case exercising the multi-step (blocked, parallel) grid.
    x, w1, b1, w2, b2 = _make_inputs(k_big, 16, 64, 128, 256)
    ctx, attn = additive_attention(x, w1, b1, w2, b2, block_b=8)
    jax.block_until_ready((ctx, attn))
    ctx_r, attn_r = additive_attention_ref(x, w1, b1, w2, b2)
    assert jnp.allclose(ctx, ctx_r, atol=1e-4, rtol=1e-4)
    assert jnp.allclose(attn, attn_r, atol=1e-4, rtol=1e-4)

    print("KERNEL_OK")
</pallas_src>

<mosaic_0001>
module attributes {stable_mosaic.version = 11 : i64} {
  func.func @_additive_attention_kernel(%arg0: i32, %arg1: memref<2x8x32xf32, #tpu.memory_space<vmem>>, %arg2: memref<32x64xf32, #tpu.memory_space<vmem>>, %arg3: memref<1x64xf32, #tpu.memory_space<vmem>>, %arg4: memref<1x64xf32, #tpu.memory_space<vmem>>, %arg5: memref<1x1xf32, #tpu.memory_space<smem>>, %arg6: memref<2x32xf32, #tpu.memory_space<vmem>>, %arg7: memref<2x8xf32, #tpu.memory_space<vmem>>) attributes {dimension_semantics = [#tpu.dimension_semantics<parallel>], iteration_bounds = array<i64: 1>, scalar_prefetch = 0 : i64, scratch_operands = 0 : i64, tpu.core_type = #tpu.core_type<tc>, window_params = [{transform_indices = @transform_0, window_bounds = array<i64: 2, 8, 32>}, {pipeline_mode = #tpu.pipeline_mode<synchronous>, transform_indices = @transform_1, window_bounds = array<i64: 32, 64>}, {pipeline_mode = #tpu.pipeline_mode<synchronous>, transform_indices = @transform_2, window_bounds = array<i64: 1, 64>}, {pipeline_mode = #tpu.pipeline_mode<synchronous>, transform_indices = @transform_3, window_bounds = array<i64: 1, 64>}, {transform_indices = @transform_4, window_bounds = array<i64: 1, 1>}, {transform_indices = @transform_5, window_bounds = array<i64: 2, 32>}, {transform_indices = @transform_6, window_bounds = array<i64: 2, 8>}]} {
    %c0 = arith.constant 0 : index
    %c0_0 = arith.constant 0 : index
    %c0_1 = arith.constant 0 : index
    %0 = vector.load %arg1[%c0, %c0_0, %c0_1] : memref<2x8x32xf32, #tpu.memory_space<vmem>>, vector<2x8x32xf32>
    %1 = vector.shape_cast %0 : vector<2x8x32xf32> to vector<16x32xf32>
    %c0_2 = arith.constant 0 : index
    %c0_3 = arith.constant 0 : index
    %2 = vector.load %arg2[%c0_2, %c0_3] : memref<32x64xf32, #tpu.memory_space<vmem>>, vector<32x64xf32>
    %cst = arith.constant dense<0.000000e+00> : vector<16x64xf32>
    %3 = tpu.matmul %1, %2, %cst {dimension_numbers = #tpu.dot_dimension_numbers<[1], [0], [0], [1], [0, 0, 1, 1], [], []>} : vector<16x32xf32>, vector<32x64xf32>, vector<16x64xf32> -> vector<16x64xf32>
    %c0_4 = arith.constant 0 : index
    %c0_5 = arith.constant 0 : index
    %4 = vector.load %arg3[%c0_4, %c0_5] : memref<1x64xf32, #tpu.memory_space<vmem>>, vector<1x64xf32>
    %5 = vector.broadcast %4 : vector<1x64xf32> to vector<16x64xf32>
    %6 = arith.addf %3, %5 : vector<16x64xf32>
    %7 = math.tanh %6 : vector<16x64xf32>
    %8 = vector.shape_cast %7 : vector<16x64xf32> to vector<2x8x64xf32>
    %c0_6 = arith.constant 0 : index
    %c0_7 = arith.constant 0 : index
    %9 = vector.load %arg4[%c0_6, %c0_7] : memref<1x64xf32, #tpu.memory_space<vmem>>, vector<1x64xf32>
    %10 = vector.shape_cast %9 : vector<1x64xf32> to vector<1x1x64xf32>
    %11 = vector.broadcast %10 : vector<1x1x64xf32> to vector<2x8x64xf32>
    %12 = arith.mulf %8, %11 : vector<2x8x64xf32>
    %cst_8 = arith.constant dense<0.000000e+00> : vector<2x8xf32>
    %13 = vector.multi_reduction <add>, %12, %cst_8 [2] : vector<2x8x64xf32> to vector<2x8xf32>
    %c0_9 = arith.constant 0 : index
    %c0_10 = arith.constant 0 : index
    %14 = memref.load %arg5[%c0_9, %c0_10] : memref<1x1xf32, #tpu.memory_space<smem>>
    %15 = vector.broadcast %14 : f32 to vector<2x8xf32>
    %16 = arith.addf %13, %15 : vector<2x8xf32>
    %cst_11 = arith.constant dense<0xFF800000> : vector<2xf32>
    %17 = vector.multi_reduction <maximumf>, %16, %cst_11 [1] : vector<2x8xf32> to vector<2xf32>
    %18 = vector.shape_cast %17 : vector<2xf32> to vector<2x1xf32>
    %19 = vector.broadcast %18 : vector<2x1xf32> to vector<2x8xf32>
    %20 = arith.subf %16, %19 : vector<2x8xf32>
    %21 = math.exp %20 : vector<2x8xf32>
    %cst_12 = arith.constant dense<0.000000e+00> : vector<2xf32>
    %22 = vector.multi_reduction <add>, %21, %cst_12 [1] : vector<2x8xf32> to vector<2xf32>
    %23 = vector.shape_cast %22 : vector<2xf32> to vector<2x1xf32>
    %24 = tpu.reciprocal %23 {approx = true} : vector<2x1xf32> -> vector<2x1xf32>
    %25 = arith.mulf %23, %24 : vector<2x1xf32>
    %cst_13 = arith.constant 2.000000e+00 : f32
    %26 = vector.broadcast %cst_13 : f32 to vector<2x1xf32>
    %27 = arith.subf %26, %25 : vector<2x1xf32>
    %28 = arith.mulf %24, %27 : vector<2x1xf32>
    %29 = vector.broadcast %28 : vector<2x1xf32> to vector<2x8xf32>
    %30 = arith.mulf %21, %29 : vector<2x8xf32>
    %31 = vector.shape_cast %30 : vector<2x8xf32> to vector<2x1x8xf32>
    "tpu.trace_start"() <{level = 10 : i32, message = "bqs,bsd->bqd"}> : () -> ()
    %cst_14 = arith.constant dense<0.000000e+00> : vector<2x1x32xf32>
    %32 = tpu.matmul %31, %0, %cst_14 {dimension_numbers = #tpu.dot_dimension_numbers<[2], [1], [1], [2], [0, 0, 0, 1, 1, 2], [0], [0]>} : vector<2x1x8xf32>, vector<2x8x32xf32>, vector<2x1x32xf32> -> vector<2x1x32xf32>
    "tpu.trace_stop"() : () -> ()
    %33 = vector.shape_cast %32 : vector<2x1x32xf32> to vector<2x32xf32>
    %c0_15 = arith.constant 0 : index
    %c0_16 = arith.constant 0 : index
    %34 = vector.load %arg6[%c0_15, %c0_16] : memref<2x32xf32, #tpu.memory_space<vmem>>, vector<2x32xf32>
    tpu.vector_store %arg6[%c0_15, %c0_16], %33 {strides = array<i32>} : memref<2x32xf32, #tpu.memory_space<vmem>>, vector<2x32xf32>,
    %c0_17 = arith.constant 0 : index
    %c0_18 = arith.constant 0 : index
    %35 = vector.load %arg7[%c0_17, %c0_18] : memref<2x8xf32, #tpu.memory_space<vmem>>, vector<2x8xf32>
    tpu.vector_store %arg7[%c0_17, %c0_18], %30 {strides = array<i32>} : memref<2x8xf32, #tpu.memory_space<vmem>>, vector<2x8xf32>,
    return
  }
  func.func @transform_0(%arg0: i32) -> (i32, i32, i32) {
    %c0_i32 = arith.constant 0 : i32
    %c0_i32_0 = arith.constant 0 : i32
    %c0_i32_1 = arith.constant 0 : i32
    return %arg0, %c0_i32, %c0_i32_0 : i32, i32, i32
  }
  func.func @transform_1(%arg0: i32) -> (i32, i32) {
    %c0_i32 = arith.constant 0 : i32
    %c0_i32_0 = arith.constant 0 : i32
    %c0_i32_1 = arith.constant 0 : i32
    return %c0_i32, %c0_i32_0 : i32, i32
  }
  func.func @transform_2(%arg0: i32) -> (i32, i32) {
    %c0_i32 = arith.constant 0 : i32
    %c0_i32_0 = arith.constant 0 : i32
    %c0_i32_1 = arith.constant 0 : i32
    return %c0_i32, %c0_i32_0 : i32, i32
  }
  func.func @transform_3(%arg0: i32) -> (i32, i32) {
    %c0_i32 = arith.constant 0 : i32
    %c0_i32_0 = arith.constant 0 : i32
    %c0_i32_1 = arith.constant 0 : i32
    return %c0_i32, %c0_i32_0 : i32, i32
  }
  func.func @transform_4(%arg0: i32) -> (i32, i32) {
    %c0_i32 = arith.constant 0 : i32
    %c0_i32_0 = arith.constant 0 : i32
    %c0_i32_1 = arith.constant 0 : i32
    return %c0_i32, %c0_i32_0 : i32, i32
  }
  func.func @transform_5(%arg0: i32) -> (i32, i32) {
    %c0_i32 = arith.constant 0 : i32
    %c0_i32_0 = arith.constant 0 : i32
    return %arg0, %c0_i32 : i32, i32
  }
  func.func @transform_6(%arg0: i32) -> (i32, i32) {
    %c0_i32 = arith.constant 0 : i32
    %c0_i32_0 = arith.constant 0 : i32
    return %arg0, %c0_i32 : i32, i32
  }
}

</mosaic_0001>

<llo_original>
// kernel: tpu_custom_call.1
$region0: #{tpu_custom_call.1}
  #allocation0 [shape = 'u32[]', space=smem, size = 0x4, offset = 0x4, fixed_abs, tag = 'smem constant byte address 0x4 - core index']
  #allocation1 [shape = 'u32[144,128]{1,0:T(1,128)}', space=vmem, size = 0x12000, scoped, tag = 'internal scratch']
  #allocation2 [shape = 'f32[1,1]{1,0:T(1,128)S(6)}', space=smem, size = 0x200, scoped, tag = 'scoped memory for tpu_custom_call.1']
  %s0 = inlined_call_operand.hbm [shape: f32[2,8,32], index: 0, kind: input, shape index: {}]
  %s1 = inlined_call_operand.hbm [shape: f32[32,64], index: 1, kind: input, shape index: {}]
  %s2 = inlined_call_operand.vmem [shape: f32[1,64], index: 2, kind: input, shape index: {}]
  %s3 = inlined_call_operand.vmem [shape: f32[1,64], index: 3, kind: input, shape index: {}]
  %s4 = inlined_call_operand.<no memory space> [shape: f32[1,1], index: 4, kind: input, shape index: {}]
  %s5 = inlined_call_operand.hbm [shape: f32[2,32], index: 5, kind: output, shape index: {0}]
  %s6 = inlined_call_operand.hbm [shape: f32[2,8], index: 6, kind: output, shape index: {1}]
  %7 = xla_tuple %s5, %s6
  %s8 = sld [smem:[#allocation0]]
  $region46: #{tpu_custom_call.1} parent=0
    _
  %s10 = ssub.s32 1, %s8
  %s11 = scalar_select 0, %s10, %s8
  %12 = sst [smem:[#allocation2]] %s4
  $region1: #{tpu_custom_call.1} parent=0
    #allocation3 [shape = 'u8[8192]{0}', space=vmem, size = 0x2000, scoped, tag = 'input window, operand 0, single buffered']
    #allocation4 [shape = 's32[1]{0}', space=sflag, size = 0x4, scoped, tag = 'scoped memory for tpu_custom_call.1']
    #allocation5 [shape = 's32[1]{0}', space=sflag, size = 0x4, scoped, tag = 'scoped memory for tpu_custom_call.1']
    #allocation6 [shape = 'u8[16384]{0}', space=vmem, size = 0x4000, scoped, tag = 'input window, operand 1, single buffered']
    #allocation7 [shape = 's32[1]{0}', space=sflag, size = 0x4, scoped, tag = 'scoped memory for tpu_custom_call.1']
    #allocation8 [shape = 'u8[1024]{0}', space=vmem, size = 0x400, scoped, tag = 'output window, operand 0, single buffered']
    #allocation9 [shape = 'u8[1024]{0}', space=vmem, size = 0x400, scoped, tag = 'output window, operand 1, single buffered']
    #allocation10 [shape = 's32[1]{0}', space=sflag, size = 0x4, scoped, tag = 'scoped memory for tpu_custom_call.1']
    %13 = vsyncpa [#allocation4], 0
    %14 = vsyncpa [#allocation7], 0
    %15 = vsyncpa [#allocation5], 0
    %16 = vsyncpa [#allocation10], 0
    // Predicated region
    $region2: #{tpu_custom_call.1} parent=1 // pred_check
      _
    $region3: #{tpu_custom_call.1} parent=1 // pred_check_branch
      %18 = sbr.rel (0) target = $region5
    $region4: #{tpu_custom_call.1} parent=1 // pred_region
      %s20 = ssub.s32 256, 256
      %21 = vsyncadd [#allocation4], %s20
      %s22 = sshll.u32 [#allocation3], 4
      %s23 = int_to_ptr.vmem [resolvable:$true] %s22
      %28 = dma.hbm_to_vmem [thread:$0]  %s0, 256, %s23, [#allocation4], 128, 128, 8
    $region5: #{tpu_custom_call.1} parent=1 // pred_fallthru
      _
    // Predicated region
    $region6: #{tpu_custom_call.1} parent=1 // pred_check
      _
    $region7: #{tpu_custom_call.1} parent=1 // pred_check_branch
      %30 = sbr.rel (0) target = $region9
    $region8: #{tpu_custom_call.1} parent=1 // pred_region
      %s32 = ssub.s32 512, 512
      %33 = vsyncadd [#allocation7], %s32
      %s34 = sshll.u32 [#allocation6], 4
      %s35 = int_to_ptr.vmem [resolvable:$true] %s34
      %40 = dma.hbm_to_vmem [thread:$0]  %s1, 512, %s35, [#allocation7], 128, 128, 8
    $region9: #{tpu_custom_call.1} parent=1 // pred_fallthru
      _
    // Predicated region
    $region10: #{tpu_custom_call.1} parent=1 // pred_check
      _
    $region11: #{tpu_custom_call.1} parent=1 // pred_check_branch
      %42 = sbr.rel (0) target = $region13
    $region12: #{tpu_custom_call.1} parent=1 // pred_region
      _
    $region13: #{tpu_custom_call.1} parent=1 // pred_fallthru
      _
    // Predicated region
    $region14: #{tpu_custom_call.1} parent=1 // pred_check
      _
    $region15: #{tpu_custom_call.1} parent=1 // pred_check_branch
      %44 = sbr.rel (0) target = $region17
    $region16: #{tpu_custom_call.1} parent=1 // pred_region
      _
    $region17: #{tpu_custom_call.1} parent=1 // pred_fallthru
      _
    // Predicated region
    $region18: #{tpu_custom_call.1} parent=1 // pred_check
      _
    $region19: #{tpu_custom_call.1} parent=1 // pred_check_branch
      %46 = sbr.rel (0) target = $region21
    $region20: #{tpu_custom_call.1} parent=1 // pred_region
      _
    $region21: #{tpu_custom_call.1} parent=1 // pred_fallthru
      _
    // Predicated region
    $region22: #{tpu_custom_call.1} parent=1 // pred_check
      _
    $region23: #{tpu_custom_call.1} parent=1 // pred_check_branch
      %48 = sbr.rel (0) target = $region25
    $region24: #{tpu_custom_call.1} parent=1 // pred_region
      %49 = dma.done [#allocation4], 256
    $region25: #{tpu_custom_call.1} parent=1 // pred_fallthru
      _
    // Predicated region
    $region26: #{tpu_custom_call.1} parent=1 // pred_check
      _
    $region27: #{tpu_custom_call.1} parent=1 // pred_check_branch
      %51 = sbr.rel (0) target = $region29
    $region28: #{tpu_custom_call.1} parent=1 // pred_region
      %52 = dma.done [#allocation7], 512
    $region29: #{tpu_custom_call.1} parent=1 // pred_fallthru
      _
    %v53 = vld [vmem:[#allocation3] sm:$0xff]
    %v54 = vld [vmem:[#allocation3 + $0x8] sm:$0xff]
    %v55 = vld [vmem:[#allocation6] sm:$0xff]
    %v56 = vld [vmem:[#allocation6 + $0x8] sm:$0xff]
    %v57 = vld [vmem:[#allocation6 + $0x10] sm:$0xff]
    %v58 = vld [vmem:[#allocation6 + $0x18] sm:$0xff]
    %v59 = vld [vmem:[%s2] sm:$0x1]
    %v61 = vlaneseq
    %v62 = vshrl.u32 %v61, 7
    %v63 = vsub.s32 0, %v62
    %v64 = vrot.slane %v59, %v63
    %vm66 = vcmask 261120
    %v68 = vsel %vm66, %v53, 0
    %v71 = vsel %vm66, %v54, 0
    %73 = vmatprep.subr.mxu0 0.0
    %74 = vmatpush1.msra.mxu0 %v55
    %75 = vmatprep.subr.mxu0 0.0
    %76 = vmatpush1.msra.mxu0 %v56
    %77 = vmatprep.subr.mxu0 0.0
    %78 = vmatpush1.msra.mxu0 %v57
    %79 = vmatprep.subr.mxu0 0.0
    %80 = vmatpush1.msra.mxu0 %v58
    %81 = vmatprep.subr.mxu0 0.0
    %82 = vmatpush1.msra.mxu0 0.0
    %83 = vmatprep.subr.mxu0 0.0
    %84 = vmatpush1.msra.mxu0 0.0
    %85 = vmatprep.subr.mxu0 0.0
    %86 = vmatpush1.msra.mxu0 0.0
    %87 = vmatprep.subr.mxu0 0.0
    %88 = vmatpush1.msra.mxu0 0.0
    %89 = vmatprep.subr.mxu0 0.0
    %90 = vmatpush1.msra.mxu0 0.0
    %91 = vmatprep.subr.mxu0 0.0
    %92 = vmatpush1.msra.mxu0 0.0
    %93 = vmatprep.subr.mxu0 0.0
    %94 = vmatpush1.msra.mxu0 0.0
    %95 = vmatprep.subr.mxu0 0.0
    %96 = vmatpush1.msra.mxu0 0.0
    %97 = vmatprep.subr.mxu0 0.0
    %98 = vmatpush1.msra.mxu0 0.0
    %99 = vmatprep.subr.mxu0 0.0
    %100 = vmatpush1.msra.mxu0 0.0
    %101 = vmatprep.subr.mxu0 0.0
    %102 = vmatpush1.msra.mxu0 0.0
    %103 = vmatprep.subr.mxu0 0.0
    %104 = vmatpush1.msra.mxu0 0.0
    %105 = vmatprep.subr.mxu0 0.0
    %106 = vmatpush1.msra.mxu0 0.0
    %107 = vmatprep.subr.mxu0 0.0
    %108 = vmatpush1.msra.mxu0 0.0
    %109 = vmatprep.subr.mxu0 0.0
    %110 = vmatpush1.msra.mxu0 0.0
    %111 = vmatprep.subr.mxu0 0.0
    %112 = vmatpush1.msra.mxu0 0.0
    %113 = vmatprep.subr.mxu0 0.0
    %114 = vmatpush1.msra.mxu0 0.0
    %115 = vmatprep.subr.mxu0 0.0
    %116 = vmatpush1.msra.mxu0 0.0
    %117 = vmatprep.subr.mxu0 0.0
    %118 = vmatpush1.msra.mxu0 0.0
    %119 = vmatprep.subr.mxu0 0.0
    %120 = vmatpush1.msra.mxu0 0.0
    %121 = vmatprep.subr.mxu0 0.0
    %122 = vmatpush1.msra.mxu0 0.0
    %123 = vmatprep.subr.mxu0 0.0
    %124 = vmatpush1.msra.mxu0 0.0
    %125 = vmatprep.subr.mxu0 0.0
    %126 = vmatpush1.msra.mxu0 0.0
    %127 = vmatprep.subr.mxu0 0.0
    %128 = vmatpush1.msra.mxu0 0.0
    %129 = vmatprep.subr.mxu0 0.0
    %130 = vmatpush1.msra.mxu0 0.0
    %131 = vmatprep.subr.mxu0 0.0
    %132 = vmatpush1.msra.mxu0 0.0
    %133 = vmatprep.subr.mxu0 0.0
    %134 = vmatpush1.msra.mxu0 0.0
    %135 = vmatprep.subr.mxu0 0.0
    %136 = vmatpush1.msra.mxu0 0.0
    %137 = vmatprep.mubr.f32.mxu0 0.0
    %138 = vmatmul.mubr.f32.gmra.mrb[0].mxu0 %v68
    %v139 = vpop.f32.mrb[0].mxu0
    %v140 = vadd.f32 %v64, %v139
    %v141 = vpop.f32.mrb[0].mxu0
    %142 = vmatprep.mubr.f32.mxu0 0.0
    %143 = vmatmul.mubr.f32.gmra.mrb[0].mxu0 %v71
    %v144 = vpop.f32.mrb[0].mxu0
    %v145 = vadd.f32 %v64, %v144
    %v146 = vpop.f32.mrb[0].mxu0
    %147 = vdwg.mxu0
    %v148 = vtanh.pop %v140
    %v149 = vtanh.pop %v145
    %v150 = vld [vmem:[%s3] sm:$0x1]
    %v152 = vlaneseq
    %v153 = vshrl.u32 %v152, 7
    %v154 = vsub.s32 0, %v153
    %v155 = vrot.slane %v150, %v154
    %v157 = vmul.f32 %v148, %v155
    %v158 = vmul.f32 %v149, %v155
    %vm159 = vcmask 523264
    %v160 = vsel %vm159, %v157, 0.0
    %161 = vadd.xlane.f32.xlu0 %v160
    %v162 = vpop.xlane.xlu0 %161
    %v163 = vsel %vm159, %v158, 0.0
    %164 = vadd.xlane.f32.xlu0 %v163
    %v165 = vpop.xlane.xlu0 %164
    %s166 = sld [smem:[#allocation2]]
    %v167 = vstv %s166
    %v168 = vadd.f32 %v162, %v167
    %v169 = vadd.f32 %v165, %v167
    %v172 = vlaneseq
    %v173 = vand.u32 %v172, 127
    %v174 = vlaneseq
    %v175 = vshrl.u32 %v174, 7
    %v176 = vsub.s32 %v173, %v175
    %v177 = vrot.slane %v168, %v176
    %v178 = vlaneseq
    %v179 = vshrl.u32 %v178, 7
    %v180 = vsub.s32 %v173, %v179
    %v181 = vrot.slane %v169, %v180
    %vm182 = vcmask 1041409
    %v183 = vsel %vm182, %v181, %v177
    %vm185 = vcmask 58368
    %v186 = vsel %vm185, %v183, -inf
    %187 = vmax.xlane.f32.xlu0 %v186
    %v188 = vpop.xlane.xlu0 %187
    %v190 = vlaneseq
    %v191 = vshrl.u32 %v190, 7
    %v192 = vsub.s32 0, %v191
    %v193 = vrot.slane %v188, %v192
    %v194 = vlaneseq
    %v195 = vshrl.u32 %v194, 7
    %v196 = vsub.s32 1, %v195
    %v197 = vrot.slane %v188, %v196
    %v200 = vsub.f32 %v168, %v193
    %v201 = vsub.f32 %v169, %v197
    %v202 = vmul.f32 %v200, 1.442695
    %v203 = vpow.pop %v202
    %v204 = vmul.f32 %v201, 1.442695
    %v205 = vpow.pop %v204
    %208 = vset.pattern.permute.xlu0 0
    %209 = vperm.xlu0 %208, %v203
    %v210 = vpop.permute.xlu0 %209
    %211 = vset.pattern.permute.xlu0 0
    %212 = vperm.xlu0 %211, %v205
    %v213 = vpop.permute.xlu0 %212
    %v214 = vlaneseq
    %v215 = vshrl.u32 %v214, 7
    %v216 = vsub.s32 %v173, %v215
    %v217 = vrot.slane %v210, %v216
    %v218 = vlaneseq
    %v219 = vshrl.u32 %v218, 7
    %v220 = vsub.s32 %v173, %v219
    %v221 = vrot.slane %v213, %v220
    %v222 = vsel %vm182, %v221, %v217
    %v224 = vsel %vm185, %v222, 0.0
    %225 = vadd.xlane.f32.xlu0 %v224
    %v226 = vpop.xlane.xlu0 %225
    %v227 = vrcp.pop %v226
    %v228 = vmul.f32 %v226, %v227
    %v229 = vsub.f32 2.0, %v228
    %v230 = vmul.f32 %v227, %v229
    %v232 = vlaneseq
    %v233 = vshrl.u32 %v232, 7
    %v234 = vsub.s32 0, %v233
    %v235 = vrot.slane %v230, %v234
    %v236 = vlaneseq
    %v237 = vshrl.u32 %v236, 7
    %v238 = vsub.s32 1, %v237
    %v239 = vrot.slane %v230, %v238
    %v242 = vmul.f32 %v203, %v235
    %v243 = vmul.f32 %v205, %v239
    %245 = vset.pattern.permute.xlu0 0
    %246 = vperm.xlu0 %245, %v242
    %v247 = vpop.permute.xlu0 %246
    %v248 = vlaneseq
    %v249 = vshrl.u32 %v248, 7
    %v250 = vsub.s32 %v173, %v249
    %v251 = vrot.slane %v247, %v250
    %vm252 = vcmask 64512
    %v253 = vsel %vm252, %v251, 0
    %255 = vmatprep.subr.mxu0 0.0
    %256 = vmatpush1.msra.mxu0 %v53
    %257 = vmatprep.subr.mxu0 0.0
    %258 = vmatpush1.msra.mxu0 0.0
    %259 = vmatprep.subr.mxu0 0.0
    %260 = vmatpush1.msra.mxu0 0.0
    %261 = vmatprep.subr.mxu0 0.0
    %262 = vmatpush1.msra.mxu0 0.0
    %263 = vmatprep.subr.mxu0 0.0
    %264 = vmatpush1.msra.mxu0 0.0
    %265 = vmatprep.subr.mxu0 0.0
    %266 = vmatpush1.msra.mxu0 0.0
    %267 = vmatprep.subr.mxu0 0.0
    %268 = vmatpush1.msra.mxu0 0.0
    %269 = vmatprep.subr.mxu0 0.0
    %270 = vmatpush1.msra.mxu0 0.0
    %271 = vmatprep.subr.mxu0 0.0
    %272 = vmatpush1.msra.mxu0 0.0
    %273 = vmatprep.subr.mxu0 0.0
    %274 = vmatpush1.msra.mxu0 0.0
    %275 = vmatprep.subr.mxu0 0.0
    %276 = vmatpush1.msra.mxu0 0.0
    %277 = vmatprep.subr.mxu0 0.0
    %278 = vmatpush1.msra.mxu0 0.0
    %279 = vmatprep.subr.mxu0 0.0
    %280 = vmatpush1.msra.mxu0 0.0
    %281 = vmatprep.subr.mxu0 0.0
    %282 = vmatpush1.msra.mxu0 0.0
    %283 = vmatprep.subr.mxu0 0.0
    %284 = vmatpush1.msra.mxu0 0.0
    %285 = vmatprep.subr.mxu0 0.0
    %286 = vmatpush1.msra.mxu0 0.0
    %287 = vmatprep.subr.mxu0 0.0
    %288 = vmatpush1.msra.mxu0 0.0
    %289 = vmatprep.subr.mxu0 0.0
    %290 = vmatpush1.msra.mxu0 0.0
    %291 = vmatprep.subr.mxu0 0.0
    %292 = vmatpush1.msra.mxu0 0.0
    %293 = vmatprep.subr.mxu0 0.0
    %294 = vmatpush1.msra.mxu0 0.0
    %295 = vmatprep.subr.mxu0 0.0
    %296 = vmatpush1.msra.mxu0 0.0
    %297 = vmatprep.subr.mxu0 0.0
    %298 = vmatpush1.msra.mxu0 0.0
    %299 = vmatprep.subr.mxu0 0.0
    %300 = vmatpush1.msra.mxu0 0.0
    %301 = vmatprep.subr.mxu0 0.0
    %302 = vmatpush1.msra.mxu0 0.0
    %303 = vmatprep.subr.mxu0 0.0
    %304 = vmatpush1.msra.mxu0 0.0
    %305 = vmatprep.subr.mxu0 0.0
    %306 = vmatpush1.msra.mxu0 0.0
    %307 = vmatprep.subr.mxu0 0.0
    %308 = vmatpush1.msra.mxu0 0.0
    %309 = vmatprep.subr.mxu0 0.0
    %310 = vmatpush1.msra.mxu0 0.0
    %311 = vmatprep.subr.mxu0 0.0
    %312 = vmatpush1.msra.mxu0 0.0
    %313 = vmatprep.subr.mxu0 0.0
    %314 = vmatpush1.msra.mxu0 0.0
    %315 = vmatprep.subr.mxu0 0.0
    %316 = vmatpush1.msra.mxu0 0.0
    %317 = vmatprep.subr.mxu0 0.0
    %318 = vmatpush1.msra.mxu0 0.0
    %319 = vmatprep.mubr.f32.mxu0 0.0
    %320 = vmatmul.mubr.f32.gmra.mrb[0].mxu0 %v253
    %v321 = vpop.f32.mrb[0].mxu0
    %v322 = vadd.f32 0.0, %v321
    %v323 = vpop.f32.mrb[0].mxu0
    %324 = vdwg.mxu0
    %326 = vset.pattern.permute.xlu0 0
    %327 = vperm.xlu0 %326, %v243
    %v328 = vpop.permute.xlu0 %327
    %v329 = vlaneseq
    %v330 = vshrl.u32 %v329, 7
    %v331 = vsub.s32 %v173, %v330
    %v332 = vrot.slane %v328, %v331
    %v333 = vsel %vm252, %v332, 0
    %335 = vmatprep.subr.mxu0 0.0
    %336 = vmatpush1.msra.mxu0 %v54
    %337 = vmatprep.subr.mxu0 0.0
    %338 = vmatpush1.msra.mxu0 0.0
    %339 = vmatprep.subr.mxu0 0.0
    %340 = vmatpush1.msra.mxu0 0.0
    %341 = vmatprep.subr.mxu0 0.0
    %342 = vmatpush1.msra.mxu0 0.0
    %343 = vmatprep.subr.mxu0 0.0
    %344 = vmatpush1.msra.mxu0 0.0
    %345 = vmatprep.subr.mxu0 0.0
    %346 = vmatpush1.msra.mxu0 0.0
    %347 = vmatprep.subr.mxu0 0.0
    %348 = vmatpush1.msra.mxu0 0.0
    %349 = vmatprep.subr.mxu0 0.0
    %350 = vmatpush1.msra.mxu0 0.0
    %351 = vmatprep.subr.mxu0 0.0
    %352 = vmatpush1.msra.mxu0 0.0
    %353 = vmatprep.subr.mxu0 0.0
    %354 = vmatpush1.msra.mxu0 0.0
    %355 = vmatprep.subr.mxu0 0.0
    %356 = vmatpush1.msra.mxu0 0.0
    %357 = vmatprep.subr.mxu0 0.0
    %358 = vmatpush1.msra.mxu0 0.0
    %359 = vmatprep.subr.mxu0 0.0
    %360 = vmatpush1.msra.mxu0 0.0
    %361 = vmatprep.subr.mxu0 0.0
    %362 = vmatpush1.msra.mxu0 0.0
    %363 = vmatprep.subr.mxu0 0.0
    %364 = vmatpush1.msra.mxu0 0.0
    %365 = vmatprep.subr.mxu0 0.0
    %366 = vmatpush1.msra.mxu0 0.0
    %367 = vmatprep.subr.mxu0 0.0
    %368 = vmatpush1.msra.mxu0 0.0
    %369 = vmatprep.subr.mxu0 0.0
    %370 = vmatpush1.msra.mxu0 0.0
    %371 = vmatprep.subr.mxu0 0.0
    %372 = vmatpush1.msra.mxu0 0.0
    %373 = vmatprep.subr.mxu0 0.0
    %374 = vmatpush1.msra.mxu0 0.0
    %375 = vmatprep.subr.mxu0 0.0
    %376 = vmatpush1.msra.mxu0 0.0
    %377 = vmatprep.subr.mxu0 0.0
    %378 = vmatpush1.msra.mxu0 0.0
    %379 = vmatprep.subr.mxu0 0.0
    %380 = vmatpush1.msra.mxu0 0.0
    %381 = vmatprep.subr.mxu0 0.0
    %382 = vmatpush1.msra.mxu0 0.0
    %383 = vmatprep.subr.mxu0 0.0
    %384 = vmatpush1.msra.mxu0 0.0
    %385 = vmatprep.subr.mxu0 0.0
    %386 = vmatpush1.msra.mxu0 0.0
    %387 = vmatprep.subr.mxu0 0.0
    %388 = vmatpush1.msra.mxu0 0.0
    %389 = vmatprep.subr.mxu0 0.0
    %390 = vmatpush1.msra.mxu0 0.0
    %391 = vmatprep.subr.mxu0 0.0
    %392 = vmatpush1.msra.mxu0 0.0
    %393 = vmatprep.subr.mxu0 0.0
    %394 = vmatpush1.msra.mxu0 0.0
    %395 = vmatprep.subr.mxu0 0.0
    %396 = vmatpush1.msra.mxu0 0.0
    %397 = vmatprep.subr.mxu0 0.0
    %398 = vmatpush1.msra.mxu0 0.0
    %399 = vmatprep.mubr.f32.mxu0 0.0
    %400 = vmatmul.mubr.f32.gmra.mrb[0].mxu0 %v333
    %v401 = vpop.f32.mrb[0].mxu0
    %v402 = vadd.f32 0.0, %v401
    %v403 = vpop.f32.mrb[0].mxu0
    %404 = vdwg.mxu0
    %v407 = vrot.slane %v402, 7
    %v408 = vsel %vm182, %v407, %v322
    %vm410 = vcmask 254976
    %411 = vst.msk [vmem:[#allocation8] sm:$0x3] %vm410, %v408
    %v412 = vsel %vm182, %v332, %v251
    %414 = vst.msk [vmem:[#allocation9] sm:$0x3] %vm185, %v412
    // Predicated region
    $region30: #{tpu_custom_call.1} parent=1 // pred_check
      _
    $region31: #{tpu_custom_call.1} parent=1 // pred_check_branch
      %416 = sbr.rel (0) target = $region33
    $region32: #{tpu_custom_call.1} parent=1 // pred_region
      %s418 = ssub.s32 32, 32
      %419 = vsyncadd [#allocation5], %s418
      %s421 = sshll.u32 [#allocation8], 4
      %s422 = int_to_ptr.vmem [resolvable:$true] %s421
      %424 = dma.vmem_to_hbm [thread:$0]  %s422, 32, %s5, [#allocation5]
    $region33: #{tpu_custom_call.1} parent=1 // pred_fallthru
      _
    // Predicated region
    $region34: #{tpu_custom_call.1} parent=1 // pred_check
      _
    $region35: #{tpu_custom_call.1} parent=1 // pred_check_branch
      %426 = sbr.rel (0) target = $region37
    $region36: #{tpu_custom_call.1} parent=1 // pred_region
      %s428 = ssub.s32 32, 32
      %429 = vsyncadd [#allocation10], %s428
      %s431 = sshll.u32 [#allocation9], 4
      %s432 = int_to_ptr.vmem [resolvable:$true] %s431
      %434 = dma.vmem_to_hbm [thread:$0]  %s432, 32, %s6, [#allocation10]
    $region37: #{tpu_custom_call.1} parent=1 // pred_fallthru
      _
    // Predicated region
    $region38: #{tpu_custom_call.1} parent=1 // pred_check
      _
    $region39: #{tpu_custom_call.1} parent=1 // pred_check_branch
      %436 = sbr.rel (0) target = $region41
    $region40: #{tpu_custom_call.1} parent=1 // pred_region
      %437 = dma.done [#allocation5], 32
    $region41: #{tpu_custom_call.1} parent=1 // pred_fallthru
      _
    // Predicated region
    $region42: #{tpu_custom_call.1} parent=1 // pred_check
      _
    $region43: #{tpu_custom_call.1} parent=1 // pred_check_branch
      %439 = sbr.rel (0) target = $region45
    $region44: #{tpu_custom_call.1} parent=1 // pred_region
      %440 = dma.done [#allocation10], 32
    $region45: #{tpu_custom_call.1} parent=1 // pred_fallthru
      _
    %441 = vsyncpa [#allocation4], 1
    %442 = vsyncpa [#allocation7], 1
    %443 = vsyncpa [#allocation5], 1
    %444 = vsyncpa [#allocation10], 1

</llo_original>
